<compile_context>
chip_gen: v7x
topology: tpu7x:2x2x1
jax: 0.10.0
libtpu: 0.0.40
codegen_flags: <defaults>
</compile_context>

<pallas_src>
import jax
import jax.numpy as jnp
from jax.experimental import pallas as pl
from jax.experimental.pallas import tpu as pltpu

_LANE = 128
_SUBLANE = 8


# ---------------- kernel ----------------

def _actnorm_kernel(x_ref, scale_ref, shift_ref, y_ref):
    # Pure streaming FMA on the VPU; scale/shift are (1, td) and broadcast
    # across the row tile.
    x = x_ref[...].astype(scale_ref.dtype)
    y_ref[...] = (x * scale_ref[...] + shift_ref[...]).astype(y_ref.dtype)


# ---------------- wrapper ----------------

def actnorm_forward(inputs, weight, bias, mode="direct", *, target_tile_bytes=4 << 20):
    """Pallas implementation of ActNorm.forward (post-initialization).

    inputs: (B, D)   weight: (D,)   bias: (D,)
    returns: (y, logdet) with y: (B, D), logdet: (B, 1)
    """
    B, D = inputs.shape
    w = weight.reshape(D).astype(jnp.float32)
    b = bias.reshape(D).astype(jnp.float32)

    # Fold parameter math once (O(D)) so the kernel is a pure elementwise pass.
    if mode == "direct":
        scale = jnp.exp(w)
        shift = -b * scale                       # (x - b) * e^w == x*scale + shift
        ldval = jnp.sum(w, dtype=jnp.float32)
    elif mode == "inverse":
        scale = jnp.exp(-w)
        shift = b
        ldval = -jnp.sum(w, dtype=jnp.float32)
    else:
        raise ValueError(f"unknown mode {mode!r}")

    # logdet is a per-call constant -> pure broadcast, no kernel output needed.
    logdet = jnp.full((B, 1), ldval, dtype=jnp.float32)

    # bf16-native compute on v6e/v7x; f32 otherwise.
    # TODO(synk): on v5e (no bf16 VALU) an f32 compute path would be preferable
    # for bf16 inputs; there is no clean in-kernel chip dispatch here.
    compute_dtype = jnp.bfloat16 if inputs.dtype == jnp.bfloat16 else jnp.float32
    itemsize = jnp.dtype(inputs.dtype).itemsize

    # ---- lane-dense repack (masked vst.msk stores are the main drag for small D)
    if D % _LANE == 0:
        x2, R, C = inputs, B, D
        scale2 = scale.reshape(1, D)
        shift2 = shift.reshape(1, D)
    elif (_LANE % D == 0) and ((B * D) % _LANE == 0):
        C = _LANE
        R = (B * D) // C
        rep = C // D
        x2 = inputs.reshape(R, C)                 # pack `rep` logical rows per slab
        scale2 = jnp.tile(scale, rep).reshape(1, C)
        shift2 = jnp.tile(shift, rep).reshape(1, C)
    else:
        # Fallback: full-D blocks (legal since block dim == full array dim).
        x2, R, C = inputs, B, D
        scale2 = scale.reshape(1, D)
        shift2 = shift.reshape(1, D)

    scale2 = scale2.astype(compute_dtype)
    shift2 = shift2.astype(compute_dtype)

    # ---- tile sizing by bytes (~target_tile_bytes of x per grid step)
    if C % _LANE == 0:
        max_td = max(_LANE, (target_tile_bytes // (_SUBLANE * itemsize)) // _LANE * _LANE)
        td = min(C, max_td)
    else:
        td = C                                    # full-width block (small, unaligned D)

    rows_budget = max(_SUBLANE, target_tile_bytes // max(1, td * itemsize))
    tb = min(R, rows_budget)
    # Guarantee >= 2 row steps when possible so "parallel" can use both TCs on v7x.
    if R > _SUBLANE and tb >= R:
        tb = pl.cdiv(R, 2)
    if tb < R:
        tb = max(_SUBLANE, (tb // _SUBLANE) * _SUBLANE)
    else:
        tb = R

    grid = (pl.cdiv(R, tb), pl.cdiv(C, td))

    # Explicit VMEM budget: 2x double-buffered input + output tiles + params,
    # with margin, capped safely under v7x's 64 MiB physical VMEM.
    tile_bytes = tb * td * itemsize
    param_bytes = 4 * td * jnp.dtype(compute_dtype).itemsize
    vmem_limit = int(min(56 << 20, max(24 << 20, 2 * (4 * tile_bytes + param_bytes))))

    y2 = pl.pallas_call(
        _actnorm_kernel,
        out_shape=jax.ShapeDtypeStruct((R, C), inputs.dtype),
        grid=grid,
        in_specs=[
            pl.BlockSpec((tb, td), lambda i, j: (i, j)),   # x: streamed & pipelined
            pl.BlockSpec((1, td), lambda i, j: (0, j)),    # scale: resident per col-tile
            pl.BlockSpec((1, td), lambda i, j: (0, j)),    # shift: resident per col-tile
        ],
        out_specs=pl.BlockSpec((tb, td), lambda i, j: (i, j)),
        compiler_params=pltpu.CompilerParams(
            dimension_semantics=("parallel", "parallel"),
            vmem_limit_bytes=vmem_limit,
        ),
    )(x2, scale2, shift2)

    y = y2.reshape(B, D)
    return y, logdet


def actnorm_init(inputs):
    """Data-dependent first-call initialization of the PyTorch module.

    weight = log(1 / (std(x, 0) + 1e-12)),  bias = mean(x, 0)
    (torch.Tensor.std defaults to the unbiased, ddof=1 estimator).
    """
    # TODO(synk): the stateful `initialized` flag / in-place .data.copy_ has no
    # Pallas equivalent; this one-time O(B*D) reduction is done in plain JAX.
    std = jnp.std(inputs, axis=0, ddof=1)
    weight = jnp.log(1.0 / (std + 1e-12))
    bias = jnp.mean(inputs, axis=0)
    return weight, bias


# ---------------- demo / self-test ----------------

if __name__ == "__main__":
    key = jax.random.PRNGKey(0)

    # --- main case: small D exercises the lane-dense repack path (D=32 -> L=128)
    B, D = 64, 32
    x = jax.random.normal(key, (B, D), dtype=jnp.float32) * 1.7 + 0.3

    # mimic the module's lazy first-forward initialization
    weight, bias = actnorm_init(x)

    # direct mode
    y, logdet = actnorm_forward(x, weight, bias, mode="direct")
    y = jax.block_until_ready(y)
    logdet = jax.block_until_ready(logdet)

    ref_y = (x - bias[None, :]) * jnp.exp(weight)[None, :]
    ref_ld = jnp.broadcast_to(jnp.sum(weight).reshape(1, 1), (B, 1))
    assert y.shape == (B, D) and logdet.shape == (B, 1)
    assert jnp.allclose(y, ref_y, atol=1e-5, rtol=1e-5), "direct output mismatch"
    assert jnp.allclose(logdet, ref_ld, atol=1e-5, rtol=1e-5), "direct logdet mismatch"

    # inverse mode (should round-trip the direct output back to x)
    x_rec, logdet_inv = actnorm_forward(y, weight, bias, mode="inverse")
    x_rec = jax.block_until_ready(x_rec)
    ref_x_rec = y * jnp.exp(-weight)[None, :] + bias[None, :]
    assert jnp.allclose(x_rec, ref_x_rec, atol=1e-5, rtol=1e-5), "inverse output mismatch"
    assert jnp.allclose(x_rec, x, atol=1e-4, rtol=1e-4), "round-trip mismatch"
    assert jnp.allclose(logdet_inv, -ref_ld, atol=1e-5, rtol=1e-5), "inverse logdet mismatch"

    # --- secondary case: lane-aligned D (no repack, column tiling path)
    B2, D2 = 16, 256
    x2 = jax.random.normal(jax.random.PRNGKey(1), (B2, D2), dtype=jnp.float32)
    w2, b2 = actnorm_init(x2)
    y2, ld2 = actnorm_forward(x2, w2, b2, mode="direct")
    y2 = jax.block_until_ready(y2)
    ref_y2 = (x2 - b2[None, :]) * jnp.exp(w2)[None, :]
    assert jnp.allclose(y2, ref_y2, atol=1e-5, rtol=1e-5), "aligned-D output mismatch"
    assert jnp.allclose(ld2, jnp.full((B2, 1), jnp.sum(w2)), atol=1e-5), "aligned-D logdet mismatch"

    # --- fallback case: shape that can't be repacked (full-array blocks)
    B3, D3 = 5, 7
    x3 = jax.random.normal(jax.random.PRNGKey(2), (B3, D3), dtype=jnp.float32)
    w3, b3 = actnorm_init(x3)
    y3, ld3 = actnorm_forward(x3, w3, b3, mode="direct")
    y3 = jax.block_until_ready(y3)
    ref_y3 = (x3 - b3[None, :]) * jnp.exp(w3)[None, :]
    assert jnp.allclose(y3, ref_y3, atol=1e-5, rtol=1e-5), "fallback output mismatch"

    print("KERNEL_OK")
</pallas_src>

<mosaic_0001>
module attributes {stable_mosaic.version = 11 : i64} {
  func.func @_actnorm_kernel(%arg0: i32, %arg1: i32, %arg2: memref<8x128xf32, #tpu.memory_space<vmem>>, %arg3: memref<1x128xf32, #tpu.memory_space<vmem>>, %arg4: memref<1x128xf32, #tpu.memory_space<vmem>>, %arg5: memref<8x128xf32, #tpu.memory_space<vmem>>) attributes {dimension_semantics = [#tpu.dimension_semantics<parallel>, #tpu.dimension_semantics<parallel>], iteration_bounds = array<i64: 2, 1>, scalar_prefetch = 0 : i64, scratch_operands = 0 : i64, tpu.core_type = #tpu.core_type<tc>, window_params = [{transform_indices = @transform_0, window_bounds = array<i64: 8, 128>}, {transform_indices = @transform_1, window_bounds = array<i64: 1, 128>}, {transform_indices = @transform_2, window_bounds = array<i64: 1, 128>}, {transform_indices = @transform_3, window_bounds = array<i64: 8, 128>}]} {
    %c0 = arith.constant 0 : index
    %c0_0 = arith.constant 0 : index
    %0 = vector.load %arg2[%c0, %c0_0] : memref<8x128xf32, #tpu.memory_space<vmem>>, vector<8x128xf32>
    %c0_1 = arith.constant 0 : index
    %c0_2 = arith.constant 0 : index
    %1 = vector.load %arg3[%c0_1, %c0_2] : memref<1x128xf32, #tpu.memory_space<vmem>>, vector<1x128xf32>
    %2 = vector.broadcast %1 : vector<1x128xf32> to vector<8x128xf32>
    %3 = arith.mulf %0, %2 : vector<8x128xf32>
    %c0_3 = arith.constant 0 : index
    %c0_4 = arith.constant 0 : index
    %4 = vector.load %arg4[%c0_3, %c0_4] : memref<1x128xf32, #tpu.memory_space<vmem>>, vector<1x128xf32>
    %5 = vector.broadcast %4 : vector<1x128xf32> to vector<8x128xf32>
    %6 = arith.addf %3, %5 : vector<8x128xf32>
    %c0_5 = arith.constant 0 : index
    %c0_6 = arith.constant 0 : index
    %7 = vector.load %arg5[%c0_5, %c0_6] : memref<8x128xf32, #tpu.memory_space<vmem>>, vector<8x128xf32>
    tpu.vector_store %arg5[%c0_5, %c0_6], %6 {strides = array<i32>} : memref<8x128xf32, #tpu.memory_space<vmem>>, vector<8x128xf32>,
    return
  }
  func.func @transform_0(%arg0: i32, %arg1: i32) -> (i32, i32) {
    %c0_i32 = arith.constant 0 : i32
    return %arg0, %arg1 : i32, i32
  }
  func.func @transform_1(%arg0: i32, %arg1: i32) -> (i32, i32) {
    %c0_i32 = arith.constant 0 : i32
    %c0_i32_0 = arith.constant 0 : i32
    return %c0_i32, %arg1 : i32, i32
  }
  func.func @transform_2(%arg0: i32, %arg1: i32) -> (i32, i32) {
    %c0_i32 = arith.constant 0 : i32
    %c0_i32_0 = arith.constant 0 : i32
    return %c0_i32, %arg1 : i32, i32
  }
  func.func @transform_3(%arg0: i32, %arg1: i32) -> (i32, i32) {
    %c0_i32 = arith.constant 0 : i32
    return %arg0, %arg1 : i32, i32
  }
}

</mosaic_0001>

<llo_original>
// kernel: tpu_custom_call.1
$region0: #{tpu_custom_call.1}
  #allocation0 [shape = 'u32[]', space=smem, size = 0x4, offset = 0x4, fixed_abs, tag = 'smem constant byte address 0x4 - core index']
  #allocation1 [shape = 'u32[144,128]{1,0:T(1,128)}', space=vmem, size = 0x12000, scoped, tag = 'internal scratch']
  %s0 = inlined_call_operand.hbm [shape: f32[16,128], index: 0, kind: input, shape index: {}]
  %s1 = inlined_call_operand.vmem [shape: f32[1,128], index: 1, kind: input, shape index: {}]
  %s2 = inlined_call_operand.vmem [shape: f32[1,128], index: 2, kind: input, shape index: {}]
  %s3 = inlined_call_operand.hbm [shape: f32[16,128], index: 3, kind: output, shape index: {}]
  %s4 = sld [smem:[#allocation0]]
  $region49: #{tpu_custom_call.1} parent=0
    _
  %s6 = ssub.s32 1, %s4
  %s7 = scalar_select 0, %s6, %s4
  $region1: #{tpu_custom_call.1} parent=0
    #allocation2 [shape = 'u8[8192]{0}', space=vmem, size = 0x2000, scoped, tag = 'input window, operand 0']
    #allocation3 [shape = 's32[2]{0}', space=sflag, size = 0x8, scoped, tag = 'scoped memory for tpu_custom_call.1']
    #allocation4 [shape = 's32[2]{0}', space=sflag, size = 0x8, scoped, tag = 'scoped memory for tpu_custom_call.1']
    #allocation5 [shape = 'u8[8192]{0}', space=vmem, size = 0x2000, scoped, tag = 'output window, operand 0']
    %8 = vsyncpa [#allocation3], 0
    %s9 = scalar_lea.sflag [#allocation3], 1
    %10 = vsyncpa %s9, 0
    %11 = vsyncpa [#allocation4], 0
    %s12 = scalar_lea.sflag [#allocation4], 1
    %13 = vsyncpa %s12, 0
    loop: start=0, step=1, limit=4
    $region2: #{tpu_custom_call.1} parent=1 // loop_pre_header
      _
    $region3: #{tpu_custom_call.1} parent=1 // loop_header
      %s15 = sphi 0, %s19
      %p16 = scmp.ge.s32.totalorder %s15, 4
      %s22 = sphi 0, %s34
      %s23 = sphi 0, %s30
      %s24 = sphi 0, %s22
      %s25 = sphi 0, %s23
      %s26 = sphi 0, %s24
      %s27 = sphi 0, %s25
      %s39 = sphi 0, %s41
      %s42 = sphi 0, %s39
      %s43 = sphi 0, %s42
      %s59 = sphi 0, %s43
      %s65 = sphi 0, %s67
      %s68 = sphi 0, %s65
      %s69 = sphi 0, %s68
      %s85 = sphi 0, %s69
      %s91 = sphi 0, %s93
      %s94 = sphi 0, %s91
      %s95 = sphi 0, %s94
      %s111 = sphi 0, %s95
      %s119 = sphi 0, %s121
      %s122 = sphi 0, %s119
      %s123 = sphi 0, %s122
      %s139 = sphi 0, %s123
    $region4: #{tpu_custom_call.1} parent=1 // loop_header_branch
      %18 = sbr.rel (%p16) target = $region8
    $region5: #{tpu_custom_call.1} parent=1 // loop_body
      %s20 = ssub.s32 %s15, 1
      %s21 = ssub.s32 %s15, 2
      %s28 = sadd.s32 1, %s23
      %p29 = scmp.ge.s32.totalorder %s28, 1
      %s30 = scalar_select %p29, 0, %s28
      %s31 = sadd.s32 1, %s22
      %s32 = scalar_select %p29, %s31, %s22
      %p33 = scmp.ge.s32.totalorder %s32, 2
      %s34 = scalar_select %p33, 0, %s32
      %s35 = ssub.s32 %s22, %s34
      %s36 = ssub.s32 %s23, %s30
      %s37 = sor.u32 %s35, %s36
      %p38 = scmp.eq.s32.totalorder %s37, 0
      %s40 = sadd.s32 %s39, 1
      %s41 = scalar_select %p38, %s39, %s40
      %p44 = pneg %p38
      %p45 = scmp.eq.s32.totalorder %s15, 1
      %p46 = por %p44, %p45
      %p47 = scmp.ne.s32.totalorder %s39, %s42
      %p48 = scmp.eq.s32.totalorder %s15, 0
      %p49 = por %p47, %p48
      %p50 = scmp.ne.s32.totalorder %s39, %s42
      %p51 = scmp.eq.s32.totalorder %s20, 1
      %p52 = por %p50, %p51
      %p53 = scmp.ne.s32.totalorder %s42, %s43
      %p54 = scmp.eq.s32.totalorder %s20, 0
      %p55 = por %p53, %p54
      %p56 = scmp.ne.s32.totalorder %s42, %s43
      %p57 = scmp.eq.s32.totalorder %s21, 1
      %p58 = por %p56, %p57
      %p60 = scmp.ne.s32.totalorder %s43, %s59
      %p61 = scmp.eq.s32.totalorder %s21, 0
      %p62 = por %p60, %p61
      %s63 = ssub.s32 %s23, %s30
      %p64 = scmp.eq.s32.totalorder %s63, 0
      %s66 = sadd.s32 %s65, 1
      %s67 = scalar_select %p64, %s65, %s66
      %p70 = pneg %p64
      %p71 = scmp.eq.s32.totalorder %s15, 1
      %p72 = por %p70, %p71
      %p73 = scmp.ne.s32.totalorder %s65, %s68
      %p74 = scmp.eq.s32.totalorder %s15, 0
      %p75 = por %p73, %p74
      %p76 = scmp.ne.s32.totalorder %s65, %s68
      %p77 = scmp.eq.s32.totalorder %s20, 1
      %p78 = por %p76, %p77
      %p79 = scmp.ne.s32.totalorder %s68, %s69
      %p80 = scmp.eq.s32.totalorder %s20, 0
      %p81 = por %p79, %p80
      %p82 = scmp.ne.s32.totalorder %s68, %s69
      %p83 = scmp.eq.s32.totalorder %s21, 1
      %p84 = por %p82, %p83
      %p86 = scmp.ne.s32.totalorder %s69, %s85
      %p87 = scmp.eq.s32.totalorder %s21, 0
      %p88 = por %p86, %p87
      %s89 = ssub.s32 %s23, %s30
      %p90 = scmp.eq.s32.totalorder %s89, 0
      %s92 = sadd.s32 %s91, 1
      %s93 = scalar_select %p90, %s91, %s92
      %p96 = pneg %p90
      %p97 = scmp.eq.s32.totalorder %s15, 1
      %p98 = por %p96, %p97
      %p99 = scmp.ne.s32.totalorder %s91, %s94
      %p100 = scmp.eq.s32.totalorder %s15, 0
      %p101 = por %p99, %p100
      %p102 = scmp.ne.s32.totalorder %s91, %s94
      %p103 = scmp.eq.s32.totalorder %s20, 1
      %p104 = por %p102, %p103
      %p105 = scmp.ne.s32.totalorder %s94, %s95
      %p106 = scmp.eq.s32.totalorder %s20, 0
      %p107 = por %p105, %p106
      %p108 = scmp.ne.s32.totalorder %s94, %s95
      %p109 = scmp.eq.s32.totalorder %s21, 1
      %p110 = por %p108, %p109
      %p112 = scmp.ne.s32.totalorder %s95, %s111
      %p113 = scmp.eq.s32.totalorder %s21, 0
      %p114 = por %p112, %p113
      %s115 = ssub.s32 %s22, %s34
      %s116 = ssub.s32 %s23, %s30
      %s117 = sor.u32 %s115, %s116
      %p118 = scmp.eq.s32.totalorder %s117, 0
      %s120 = sadd.s32 %s119, 1
      %s121 = scalar_select %p118, %s119, %s120
      %p124 = pneg %p118
      %p125 = scmp.eq.s32.totalorder %s15, 1
      %p126 = por %p124, %p125
      %p127 = scmp.ne.s32.totalorder %s119, %s122
      %p128 = scmp.eq.s32.totalorder %s15, 0
      %p129 = por %p127, %p128
      %p130 = scmp.ne.s32.totalorder %s119, %s122
      %p131 = scmp.eq.s32.totalorder %s20, 1
      %p132 = por %p130, %p131
      %p133 = scmp.ne.s32.totalorder %s122, %s123
      %p134 = scmp.eq.s32.totalorder %s20, 0
      %p135 = por %p133, %p134
      %p136 = scmp.ne.s32.totalorder %s122, %s123
      %p137 = scmp.eq.s32.totalorder %s21, 1
      %p138 = por %p136, %p137
      %p140 = scmp.ne.s32.totalorder %s123, %s139
      %p141 = scmp.eq.s32.totalorder %s21, 0
      %p142 = por %p140, %p141
      %p143 = scmp.le.s32.totalorder 1, %s15
      %p144 = scmp.lt.s32.totalorder %s15, 3
      %p145 = pnand %p143, %p144
      %p146 = pneg %p145
      // Predicated region
      $region9: #{tpu_custom_call.1} parent=5 // pred_check
        _
      $region10: #{tpu_custom_call.1} parent=5 // pred_check_branch
        %148 = sbr.rel (%p145) target = $region12
      $region11: #{tpu_custom_call.1} parent=5 // pred_region
        %s149 = ssub.s32 %s15, 1
        // Predicated region
        $region13: #{tpu_custom_call.1} parent=11 // pred_check
          %p150 = pneg %p81
        $region14: #{tpu_custom_call.1} parent=11 // pred_check_branch
          %152 = sbr.rel (%p150) target = $region16
        $region15: #{tpu_custom_call.1} parent=11 // pred_region
          %p153 = scmp.lt.s32.totalorder %s25, 0
          %s154 = scalar_select %p153, %s25, 0
          %s155 = scalar_lea.vmem %s1, %s154
        $region16: #{tpu_custom_call.1} parent=11 // pred_fallthru
          _
        // Predicated region
        $region17: #{tpu_custom_call.1} parent=11 // pred_check
          %p156 = pneg %p107
        $region18: #{tpu_custom_call.1} parent=11 // pred_check_branch
          %158 = sbr.rel (%p156) target = $region20
        $region19: #{tpu_custom_call.1} parent=11 // pred_region
          %p159 = scmp.lt.s32.totalorder %s25, 0
          %s160 = scalar_select %p159, %s25, 0
          %s161 = scalar_lea.vmem %s2, %s160
        $region20: #{tpu_custom_call.1} parent=11 // pred_fallthru
          _
      $region12: #{tpu_custom_call.1} parent=5 // pred_fallthru
        _
      %p162 = scmp.lt.s32.totalorder %s15, 2
      // Predicated region
      $region21: #{tpu_custom_call.1} parent=5 // pred_check
        %p163 = pneg %p162
      $region22: #{tpu_custom_call.1} parent=5 // pred_check_branch
        %165 = sbr.rel (%p163) target = $region24
      $region23: #{tpu_custom_call.1} parent=5 // pred_region
        // Predicated region
        $region25: #{tpu_custom_call.1} parent=23 // pred_check
          %p166 = pneg %p49
        $region26: #{tpu_custom_call.1} parent=23 // pred_check_branch
          %168 = sbr.rel (%p166) target = $region28
        $region27: #{tpu_custom_call.1} parent=23 // pred_region
          %s169 = sand.u32 %s39, 1
          %s170 = scalar_lea.sflag [#allocation3], %s169
          %s171 = sand.u32 %s39, 1
          %s172 = smul.addr %s171, 8
          %s173 = scalar_lea.vmem [#allocation2], %s172
          %s175 = ssub.s32 128, 128
          %176 = vsyncadd %s170, %s175
          %s177 = sadd.s32 %s23, %s22
          %s178 = smul.addr %s177, 128
          %s179 = scalar_lea.hbm %s0, %s178
          %s181 = sshll.u32 %s173, 4
          %s182 = int_to_ptr.vmem [resolvable:$true] %s181
          %184 = dma.hbm_to_vmem [thread:$0]  %s179, 128, %s182, %s170
        $region28: #{tpu_custom_call.1} parent=23 // pred_fallthru
          _
      $region24: #{tpu_custom_call.1} parent=5 // pred_fallthru
        _
      %p185 = scmp.le.s32.totalorder 1, %s15
      %p186 = scmp.lt.s32.totalorder %s15, 3
      %p187 = pnand %p185, %p186
      %p188 = pneg %p187
      // Predicated region
      $region29: #{tpu_custom_call.1} parent=5 // pred_check
        _
      $region30: #{tpu_custom_call.1} parent=5 // pred_check_branch
        %190 = sbr.rel (%p187) target = $region32
      $region31: #{tpu_custom_call.1} parent=5 // pred_region
        %s191 = ssub.s32 %s15, 1
        %s192 = sand.u32 %s42, 1
        %s193 = scalar_lea.sflag [#allocation3], %s192
        %s194 = sand.u32 %s42, 1
        %s195 = smul.addr %s194, 8
        %s196 = scalar_lea.vmem [#allocation2], %s195
        // Predicated region
        $region33: #{tpu_custom_call.1} parent=31 // pred_check
          %p197 = pneg %p55
        $region34: #{tpu_custom_call.1} parent=31 // pred_check_branch
          %199 = sbr.rel (%p197) target = $region36
        $region35: #{tpu_custom_call.1} parent=31 // pred_region
          %200 = dma.done %s193, 128
        $region36: #{tpu_custom_call.1} parent=31 // pred_fallthru
          _
        %s201 = sand.u32 %s42, 1
        %s202 = scalar_lea.sflag [#allocation3], %s201
        %s203 = sand.u32 %s42, 1
        %s204 = smul.addr %s203, 8
        %s205 = scalar_lea.vmem [#allocation2], %s204
        %p206 = pneg %p55
        %p207 = pneg %p52
        %p208 = scmp.lt.s32.totalorder %s25, 0
        %s209 = scalar_select %p208, %s25, 0
        %s210 = scalar_lea.vmem %s1, %s209
        %p211 = pneg %p81
        %p212 = pneg %p78
        %p213 = scmp.lt.s32.totalorder %s25, 0
        %s214 = scalar_select %p213, %s25, 0
        %s215 = scalar_lea.vmem %s2, %s214
        %p216 = pneg %p107
        %p217 = pneg %p104
        %p218 = pneg %p135
        %p219 = pneg %p132
        %s220 = sand.u32 %s122, 1
        %s221 = scalar_lea.sflag [#allocation4], %s220
        %s222 = sand.u32 %s122, 1
        %s223 = smul.addr %s222, 8
        %s224 = scalar_lea.vmem [#allocation5], %s223
        %p225 = scmp.lt.s32.totalorder %s25, 0
        %s226 = scalar_select %p225, %s25, 0
        %s227 = scalar_lea.vmem %s1, %s226
        %p228 = scmp.lt.s32.totalorder %s25, 0
        %s229 = scalar_select %p228, %s25, 0
        %s230 = scalar_lea.vmem %s2, %s229
        %v231 = vld [vmem:[%s196] sm:$0xff]
        %v232 = vld [vmem:[%s227] sm:$0x1]
        %v234 = vlaneseq
        %v235 = vshrl.u32 %v234, 7
        %v236 = vsub.s32 0, %v235
        %v237 = vrot.slane %v232, %v236
        %v239 = vmul.f32 %v231, %v237
        %v240 = vld [vmem:[%s230] sm:$0x1]
        %v242 = vlaneseq
        %v243 = vshrl.u32 %v242, 7
        %v244 = vsub.s32 0, %v243
        %v245 = vrot.slane %v240, %v244
        %v247 = vadd.f32 %v239, %v245
        %248 = vst [vmem:[%s224] sm:$0xff] %v247
        %s249 = sand.u32 %s122, 1
        %s250 = scalar_lea.sflag [#allocation4], %s249
        %s251 = sand.u32 %s122, 1
        %s252 = smul.addr %s251, 8
        %s253 = scalar_lea.vmem [#allocation5], %s252
        // Predicated region
        $region37: #{tpu_custom_call.1} parent=31 // pred_check
          %p254 = pneg %p132
        $region38: #{tpu_custom_call.1} parent=31 // pred_check_branch
          %256 = sbr.rel (%p254) target = $region40
        $region39: #{tpu_custom_call.1} parent=31 // pred_region
          %s258 = ssub.s32 128, 128
          %259 = vsyncadd %s250, %s258
          %s260 = sadd.s32 %s25, %s24
          %s261 = smul.addr %s260, 128
          %s262 = scalar_lea.hbm %s3, %s261
          %s264 = sshll.u32 %s253, 4
          %s265 = int_to_ptr.vmem [resolvable:$true] %s264
          %267 = dma.vmem_to_hbm [thread:$0]  %s265, 128, %s262, %s250
        $region40: #{tpu_custom_call.1} parent=31 // pred_fallthru
          _
      $region32: #{tpu_custom_call.1} parent=5 // pred_fallthru
        _
      %p268 = scmp.le.s32.totalorder 2, %s15
      // Predicated region
      $region41: #{tpu_custom_call.1} parent=5 // pred_check
        %p269 = pneg %p268
      $region42: #{tpu_custom_call.1} parent=5 // pred_check_branch
        %271 = sbr.rel (%p269) target = $region44
      $region43: #{tpu_custom_call.1} parent=5 // pred_region
        %s272 = ssub.s32 %s15, 2
        // Predicated region
        $region45: #{tpu_custom_call.1} parent=43 // pred_check
          %p273 = pneg %p138
        $region46: #{tpu_custom_call.1} parent=43 // pred_check_branch
          %275 = sbr.rel (%p273) target = $region48
        $region47: #{tpu_custom_call.1} parent=43 // pred_region
          %s276 = sand.u32 %s123, 1
          %s277 = scalar_lea.sflag [#allocation4], %s276
          %s278 = sand.u32 %s123, 1
          %s279 = smul.addr %s278, 8
          %s280 = scalar_lea.vmem [#allocation5], %s279
          %281 = dma.done %s277, 128
        $region48: #{tpu_custom_call.1} parent=43 // pred_fallthru
          _
      $region44: #{tpu_custom_call.1} parent=5 // pred_fallthru
        _
    $region6: #{tpu_custom_call.1} parent=1 // loop_footer
      %s19 = sadd.s32 1, %s15
    $region7: #{tpu_custom_call.1} parent=1 // loop_footer_branch
      %14 = sbr.rel target = $region3
    $region8: #{tpu_custom_call.1} parent=1 // loop_exit
      _
    %282 = vsyncpa [#allocation3], 1
    %s283 = scalar_lea.sflag [#allocation3], 1
    %284 = vsyncpa %s283, 1
    %285 = vsyncpa [#allocation4], 1
    %s286 = scalar_lea.sflag [#allocation4], 1
    %287 = vsyncpa %s286, 1

</llo_original>
